<compile_context>
chip_gen: v5e
topology: v5e:2x2
jax: 0.10.0
libtpu: 0.0.40
codegen_flags: <defaults>
</compile_context>

<pallas_src>
import functools

import jax
import jax.numpy as jnp
from jax import lax
from jax.experimental import pallas as pl
from jax.experimental.pallas import tpu as pltpu


# ----------------------------- kernel ---------------------------------------


def _fused_kd_kernel(x_ref, wt_ref, b_ref, s_ref, o_soft_ref, o_hard_ref,
                     acc_ref, *, tau, lam, batch, numel):
    i = pl.program_id(0)          # batch tile (parallel)
    k = pl.program_id(1)          # D (reduction) tile (arbitrary, last)
    nd = pl.num_programs(1)

    # ---- init teacher-logit accumulator, bias folded in ----
    @pl.when(k == 0)
    def _():
        acc_ref[...] = jnp.broadcast_to(
            b_ref[...].astype(jnp.float32), acc_ref.shape)

    # ---- teacher matmul partial: x(tm,tk) x W^T(K,tk) -> (tm,K) on the MXU ----
    acc_ref[...] += lax.dot_general(
        x_ref[...], wt_ref[...],
        dimension_numbers=(((1,), (1,)), ((), ())),
        preferred_element_type=jnp.float32)

    # ---- finalize this batch tile: KD losses on VMEM-resident logits ----
    @pl.when(k == nd - 1)
    def _():
        t = acc_ref[...]                              # (tm,K) teacher logits, f32
        s = s_ref[...].astype(jnp.float32)            # (tm,K) student logits
        tm_, kk = t.shape

        # mask out zero-padded batch rows (global row index >= true batch)
        row_ok = (lax.broadcasted_iota(jnp.int32, (tm_, kk), 0) + i * tm_) < batch

        inv_tau = 1.0 / tau
        # student log-softmax at temperature tau
        zs = s * inv_tau
        zs = zs - jnp.max(zs, axis=-1, keepdims=True)
        ls = zs - jnp.log(jnp.sum(jnp.exp(zs), axis=-1, keepdims=True))
        # teacher softmax / log-softmax at temperature tau (exp reused for both)
        zt = t * inv_tau
        zt = zt - jnp.max(zt, axis=-1, keepdims=True)
        et = jnp.exp(zt)
        se = jnp.sum(et, axis=-1, keepdims=True)
        lt = zt - jnp.log(se)                         # log_softmax(t/tau)
        pt = et / se                                  # softmax(t/tau)

        # soft: F.kl_div(log_softmax(s/tau), log_softmax(t/tau), 'sum',
        #                log_target=True) * tau^2 / numel * lam   (tile partial)
        kl = jnp.sum(jnp.where(row_ok, pt * (lt - ls), 0.0))
        soft_p = kl * (tau * tau) / float(numel) * lam
        o_soft_ref[...] = jnp.broadcast_to(soft_p, o_soft_ref.shape)

        # hard: F.cross_entropy(s, t.argmax(dim=1)) (mean over full batch) * lam.
        # argmax is shift/scale invariant -> reuse zt (max positions are exactly 0),
        # first maximal index wins (torch tie-break).
        zh = s - jnp.max(s, axis=-1, keepdims=True)
        lsh = zh - jnp.log(jnp.sum(jnp.exp(zh), axis=-1, keepdims=True))
        col = lax.broadcasted_iota(jnp.int32, (tm_, kk), 1)
        idx = jnp.min(jnp.where(zt == 0.0, col, kk), axis=-1, keepdims=True)
        ce = -jnp.sum(jnp.where(row_ok & (col == idx), lsh, 0.0))
        hard_p = ce / float(batch) * lam
        o_hard_ref[...] = jnp.broadcast_to(hard_p, o_hard_ref.shape)


# ----------------------------- tiling helpers --------------------------------


_VMEM_BUDGET = 24 << 20   # pipeline-buffer budget; vmem_limit raised explicitly


def _round_up(n, m):
    return (n + m - 1) // m * m


def _pick_tm(batch):
    for c in (128, 64, 32, 16, 8):
        if batch % c == 0:
            return c
    return min(128, _round_up(batch, 8))          # pad + mask the tail


def _select_tiles(batch, d, num_classes, x_bytes, w_bytes, s_bytes):
    tm = _pick_tm(batch)
    d128 = _round_up(d, 128)
    kp = _round_up(num_classes, 128)              # lane padding of K-minor bufs
    tk, need = 128, 0
    for cand in (4096, 2048, 1024, 512, 256, 128):
        c = min(cand, d128)
        need = (2 * tm * c * x_bytes              # x tiles, double-buffered
                + 2 * num_classes * c * w_bytes   # lane-dense W^T tiles
                + 2 * tm * kp * s_bytes           # student-logit tile
                + tm * kp * 4                     # f32 teacher-logit accumulator
                + 2 * kp * 4                      # bias
                + 4 * 8 * 128 * 4)                # partial-loss output blocks
        if need <= _VMEM_BUDGET:
            tk = c
            break
    return tm, tk, need


# ----------------------------- wrapper ---------------------------------------


def cls_kd_loss_both(inputs, outputs_kd, teacher_w, teacher_b, *,
                     tau=1.0, lam=1.0):
    """One fused pass over x / W^T; returns (soft_loss, hard_loss) scalars."""
    x2 = inputs.reshape(inputs.shape[0], -1)       # free reshape, no dtype cast
    B, D = x2.shape
    K = outputs_kd.shape[-1]
    assert teacher_w.shape == (D, K)

    # One-time lane-dense transpose of the frozen teacher weight: (K, D).
    wt = jnp.asarray(teacher_w).T
    if wt.dtype != x2.dtype:
        wt = wt.astype(x2.dtype)
    b2 = teacher_b.reshape(1, K).astype(jnp.float32)

    tm, tk, need = _select_tiles(B, D, K, x2.dtype.itemsize, wt.dtype.itemsize,
                                 outputs_kd.dtype.itemsize)
    B_pad = _round_up(B, tm)
    D_pad = _round_up(D, tk)
    nb, nd = B_pad // tm, D_pad // tk

    # Zero-pad tails instead of blowing up a tile to the full array (zeros are
    # inert in the matmul; padded rows are masked in the kernel finalize).
    if (B_pad, D_pad) != (B, D):
        x2 = jnp.pad(x2, ((0, B_pad - B), (0, D_pad - D)))
    if D_pad != D:
        wt = jnp.pad(wt, ((0, 0), (0, D_pad - D)))
    s2 = outputs_kd
    if B_pad != B:
        s2 = jnp.pad(s2, ((0, B_pad - B), (0, 0)))

    kernel = functools.partial(_fused_kd_kernel, tau=float(tau), lam=float(lam),
                               batch=B, numel=int(outputs_kd.size))

    # True HBM footprint: x streamed once, W^T lane-dense, student/bias small.
    bytes_accessed = (x2.size * x2.dtype.itemsize
                      + nb * wt.size * wt.dtype.itemsize
                      + s2.size * s2.dtype.itemsize
                      + b2.size * b2.dtype.itemsize
                      + 2 * nb * 8 * 128 * 4)
    cost = pl.CostEstimate(flops=2 * B_pad * D_pad * K,
                           transcendentals=4 * B_pad * K,
                           bytes_accessed=int(bytes_accessed))

    # >= 32 MiB (v5e default scoped is ~16 MiB), <= 48 MiB (v7x has 64 MiB).
    vmem_limit = int(min(48 << 20, max(32 << 20, 2 * need)))

    soft_p, hard_p = pl.pallas_call(
        kernel,
        out_shape=(jax.ShapeDtypeStruct((nb, 8, 128), jnp.float32),
                   jax.ShapeDtypeStruct((nb, 8, 128), jnp.float32)),
        grid_spec=pltpu.PrefetchScalarGridSpec(
            num_scalar_prefetch=0,
            grid=(nb, nd),                                    # reduction (D) last
            in_specs=[
                pl.BlockSpec((tm, tk), lambda i, k: (i, k)),  # x tile
                pl.BlockSpec((K, tk), lambda i, k: (0, k)),   # lane-dense W^T tile
                pl.BlockSpec((1, K), lambda i, k: (0, 0)),    # bias (resident)
                pl.BlockSpec((tm, K), lambda i, k: (i, 0)),   # student logits
            ],
            out_specs=[pl.BlockSpec((1, 8, 128), lambda i, k: (i, 0, 0)),
                       pl.BlockSpec((1, 8, 128), lambda i, k: (i, 0, 0))],
            scratch_shapes=[pltpu.VMEM((tm, K), jnp.float32)],
        ),
        compiler_params=pltpu.CompilerParams(
            dimension_semantics=("parallel", "arbitrary"),    # v7x: shard batch tiles
            vmem_limit_bytes=vmem_limit,
        ),
        cost_estimate=cost,
    )(x2, wt, b2, s2)

    soft = jnp.sum(soft_p[:, 0, 0])
    hard = jnp.sum(hard_p[:, 0, 0])
    return soft, hard


def cls_kd_loss(inputs, outputs_kd, teacher_w, teacher_b, *, kd_type="soft",
                tau=1.0, lam=1.0):
    """Module-faithful API: returns the configured KD loss (soft or hard)."""
    assert kd_type in ("soft", "hard")
    soft, hard = cls_kd_loss_both(inputs, outputs_kd, teacher_w, teacher_b,
                                  tau=tau, lam=lam)
    return soft if kd_type == "soft" else hard


# ----------------------------- main ------------------------------------------

if __name__ == "__main__":
    B, C, H, W = 2, 4, 16, 16
    K = 16                      # num_classes
    D = C * H * W

    key = jax.random.PRNGKey(0)
    k_x, k_s, k_w = jax.random.split(key, 3)

    # bf16 inputs / frozen-teacher weights halve HBM traffic on the mem-bound
    # matmul; student logits stay f32.
    inputs = jax.random.normal(k_x, (B, C, H, W), dtype=jnp.bfloat16)     # NCHW
    outputs_kd = jax.random.normal(k_s, (B, K), dtype=jnp.float32)        # student logits
    teacher_w = (jax.random.normal(k_w, (D, K), dtype=jnp.bfloat16)
                 * jnp.bfloat16(0.02))
    teacher_b = jnp.zeros((K,), dtype=jnp.float32)

    # Single fused pass over x / W^T gives both loss flavors.
    soft, hard = cls_kd_loss_both(inputs, outputs_kd, teacher_w, teacher_b,
                                  tau=2.0, lam=1.0)
    # Module-faithful single-type call (same fused kernel underneath).
    soft_only = cls_kd_loss(inputs, outputs_kd, teacher_w, teacher_b,
                            kd_type="soft", tau=2.0, lam=1.0)

    jax.block_until_ready((soft, hard, soft_only))
    print("KERNEL_OK")
</pallas_src>

<mosaic_0001>
module attributes {stable_mosaic.version = 11 : i64} {
  func.func @_fused_kd_kernel(%arg0: i32, %arg1: i32, %arg2: memref<8x1024xbf16, #tpu.memory_space<vmem>>, %arg3: memref<16x1024xbf16, #tpu.memory_space<vmem>>, %arg4: memref<1x16xf32, #tpu.memory_space<vmem>>, %arg5: memref<8x16xf32, #tpu.memory_space<vmem>>, %arg6: memref<1x8x128xf32, #tpu.memory_space<vmem>>, %arg7: memref<1x8x128xf32, #tpu.memory_space<vmem>>, %arg8: memref<8x16xf32, #tpu.memory_space<vmem>>) attributes {dimension_semantics = [#tpu.dimension_semantics<parallel>, #tpu.dimension_semantics<arbitrary>], iteration_bounds = array<i64: 1, 1>, scalar_prefetch = 0 : i64, scratch_operands = 1 : i64, tpu.core_type = #tpu.core_type<tc>, window_params = [{transform_indices = @transform_0, window_bounds = array<i64: 8, 1024>}, {transform_indices = @transform_1, window_bounds = array<i64: 16, 1024>}, {pipeline_mode = #tpu.pipeline_mode<synchronous>, transform_indices = @transform_2, window_bounds = array<i64: 1, 16>}, {transform_indices = @transform_3, window_bounds = array<i64: 8, 16>}, {transform_indices = @transform_4, window_bounds = array<i64: 1, 8, 128>}, {transform_indices = @transform_5, window_bounds = array<i64: 1, 8, 128>}]} {
    %c0_i32 = arith.constant 0 : i32
    %0 = arith.cmpi eq, %arg1, %c0_i32 : i32
    %1 = arith.extui %0 : i1 to i32
    %c0_i32_0 = arith.constant 0 : i32
    %2 = arith.cmpi ne, %1, %c0_i32_0 : i32
    scf.if %2 {
      %c0_10 = arith.constant 0 : index
      %c0_11 = arith.constant 0 : index
      %12 = vector.load %arg4[%c0_10, %c0_11] : memref<1x16xf32, #tpu.memory_space<vmem>>, vector<1x16xf32>
      %13 = vector.shape_cast %12 : vector<1x16xf32> to vector<1x16xf32>
      %14 = vector.broadcast %13 : vector<1x16xf32> to vector<8x16xf32>
      %c0_12 = arith.constant 0 : index
      %c0_13 = arith.constant 0 : index
      %15 = vector.load %arg8[%c0_12, %c0_13] : memref<8x16xf32, #tpu.memory_space<vmem>>, vector<8x16xf32>
      tpu.vector_store %arg8[%c0_12, %c0_13], %14 {strides = array<i32>} : memref<8x16xf32, #tpu.memory_space<vmem>>, vector<8x16xf32>,
    } else {
    }
    %c0 = arith.constant 0 : index
    %c0_1 = arith.constant 0 : index
    %3 = vector.load %arg8[%c0, %c0_1] : memref<8x16xf32, #tpu.memory_space<vmem>>, vector<8x16xf32>
    %c0_2 = arith.constant 0 : index
    %c0_3 = arith.constant 0 : index
    %4 = vector.load %arg2[%c0_2, %c0_3] : memref<8x1024xbf16, #tpu.memory_space<vmem>>, vector<8x1024xbf16>
    %c0_4 = arith.constant 0 : index
    %c0_5 = arith.constant 0 : index
    %5 = vector.load %arg3[%c0_4, %c0_5] : memref<16x1024xbf16, #tpu.memory_space<vmem>>, vector<16x1024xbf16>
    %cst = arith.constant dense<0.000000e+00> : vector<8x16xf32>
    %6 = tpu.matmul %4, %5, %cst {dimension_numbers = #tpu.dot_dimension_numbers<[1], [1], [0], [0], [0, 0, 1, 0], [], []>} : vector<8x1024xbf16>, vector<16x1024xbf16>, vector<8x16xf32> -> vector<8x16xf32>
    %7 = arith.addf %3, %6 : vector<8x16xf32>
    %c0_6 = arith.constant 0 : index
    %c0_7 = arith.constant 0 : index
    %8 = vector.load %arg8[%c0_6, %c0_7] : memref<8x16xf32, #tpu.memory_space<vmem>>, vector<8x16xf32>
    tpu.vector_store %arg8[%c0_6, %c0_7], %7 {strides = array<i32>} : memref<8x16xf32, #tpu.memory_space<vmem>>, vector<8x16xf32>,
    %c0_i32_8 = arith.constant 0 : i32
    %9 = arith.cmpi eq, %arg1, %c0_i32_8 : i32
    %10 = arith.extui %9 : i1 to i32
    %c0_i32_9 = arith.constant 0 : i32
    %11 = arith.cmpi ne, %10, %c0_i32_9 : i32
    scf.if %11 {
      %c0_10 = arith.constant 0 : index
      %c0_11 = arith.constant 0 : index
      %12 = vector.load %arg8[%c0_10, %c0_11] : memref<8x16xf32, #tpu.memory_space<vmem>>, vector<8x16xf32>
      %c0_12 = arith.constant 0 : index
      %c0_13 = arith.constant 0 : index
      %13 = vector.load %arg5[%c0_12, %c0_13] : memref<8x16xf32, #tpu.memory_space<vmem>>, vector<8x16xf32>
      %14 = tpu.iota {dimensions = array<i32: 0>} : vector<8x16xi32>
      %c8_i32 = arith.constant 8 : i32
      %15 = arith.muli %arg0, %c8_i32 : i32
      %16 = vector.broadcast %15 : i32 to vector<8x16xi32>
      %17 = arith.addi %14, %16 : vector<8x16xi32>
      %c2_i32 = arith.constant 2 : i32
      %18 = vector.broadcast %c2_i32 : i32 to vector<8x16xi32>
      %19 = arith.cmpi slt, %17, %18 : vector<8x16xi32>
      %cst_14 = arith.constant 5.000000e-01 : f32
      %20 = vector.broadcast %cst_14 : f32 to vector<8x16xf32>
      %21 = arith.mulf %13, %20 : vector<8x16xf32>
      %cst_15 = arith.constant dense<0xFF800000> : vector<8xf32>
      %22 = vector.multi_reduction <maximumf>, %21, %cst_15 [1] : vector<8x16xf32> to vector<8xf32>
      %23 = vector.shape_cast %22 : vector<8xf32> to vector<8x1xf32>
      %24 = vector.broadcast %23 : vector<8x1xf32> to vector<8x16xf32>
      %25 = arith.subf %21, %24 : vector<8x16xf32>
      %26 = math.exp %25 : vector<8x16xf32>
      %cst_16 = arith.constant dense<0.000000e+00> : vector<8xf32>
      %27 = vector.multi_reduction <add>, %26, %cst_16 [1] : vector<8x16xf32> to vector<8xf32>
      %28 = vector.shape_cast %27 : vector<8xf32> to vector<8x1xf32>
      %29 = math.log %28 : vector<8x1xf32>
      %30 = vector.broadcast %29 : vector<8x1xf32> to vector<8x16xf32>
      %31 = arith.subf %25, %30 : vector<8x16xf32>
      %cst_17 = arith.constant 5.000000e-01 : f32
      %32 = vector.broadcast %cst_17 : f32 to vector<8x16xf32>
      %33 = arith.mulf %12, %32 : vector<8x16xf32>
      %cst_18 = arith.constant dense<0xFF800000> : vector<8xf32>
      %34 = vector.multi_reduction <maximumf>, %33, %cst_18 [1] : vector<8x16xf32> to vector<8xf32>
      %35 = vector.shape_cast %34 : vector<8xf32> to vector<8x1xf32>
      %36 = vector.broadcast %35 : vector<8x1xf32> to vector<8x16xf32>
      %37 = arith.subf %33, %36 : vector<8x16xf32>
      %38 = math.exp %37 : vector<8x16xf32>
      %cst_19 = arith.constant dense<0.000000e+00> : vector<8xf32>
      %39 = vector.multi_reduction <add>, %38, %cst_19 [1] : vector<8x16xf32> to vector<8xf32>
      %40 = vector.shape_cast %39 : vector<8xf32> to vector<8x1xf32>
      %41 = math.log %40 : vector<8x1xf32>
      %42 = vector.broadcast %41 : vector<8x1xf32> to vector<8x16xf32>
      %43 = arith.subf %37, %42 : vector<8x16xf32>
      %44 = vector.broadcast %40 : vector<8x1xf32> to vector<8x16xf32>
      %45 = arith.divf %38, %44 : vector<8x16xf32>
      %46 = arith.subf %43, %31 : vector<8x16xf32>
      %47 = arith.mulf %45, %46 : vector<8x16xf32>
      %cst_20 = arith.constant 0.000000e+00 : f32
      %48 = vector.broadcast %cst_20 : f32 to vector<8x16xf32>
      %49 = arith.select %19, %47, %48 : vector<8x16xi1>, vector<8x16xf32>
      %50 = vector.shape_cast %49 : vector<8x16xf32> to vector<1x8x16xf32>
      %cst_21 = arith.constant dense<0.000000e+00> : vector<1xf32>
      %51 = vector.multi_reduction <add>, %50, %cst_21 [1, 2] : vector<1x8x16xf32> to vector<1xf32>
      %52 = vector.shape_cast %51 : vector<1xf32> to vector<1x1x1xf32>
      %53 = vector.extract %52[0, 0, 0] : f32 from vector<1x1x1xf32>
      %cst_22 = arith.constant 4.000000e+00 : f32
      %54 = arith.mulf %53, %cst_22 : f32
      %cst_23 = arith.constant 3.200000e+01 : f32
      %55 = arith.divf %54, %cst_23 : f32
      %cst_24 = arith.constant 1.000000e+00 : f32
      %56 = arith.mulf %55, %cst_24 : f32
      %57 = vector.broadcast %56 : f32 to vector<1x8x128xf32>
      %c0_25 = arith.constant 0 : index
      %c0_26 = arith.constant 0 : index
      %c0_27 = arith.constant 0 : index
      %58 = vector.load %arg6[%c0_25, %c0_26, %c0_27] : memref<1x8x128xf32, #tpu.memory_space<vmem>>, vector<1x8x128xf32>
      tpu.vector_store %arg6[%c0_25, %c0_26, %c0_27], %57 {strides = array<i32>} : memref<1x8x128xf32, #tpu.memory_space<vmem>>, vector<1x8x128xf32>,
      %cst_28 = arith.constant dense<0xFF800000> : vector<8xf32>
      %59 = vector.multi_reduction <maximumf>, %13, %cst_28 [1] : vector<8x16xf32> to vector<8xf32>
      %60 = vector.shape_cast %59 : vector<8xf32> to vector<8x1xf32>
      %61 = vector.broadcast %60 : vector<8x1xf32> to vector<8x16xf32>
      %62 = arith.subf %13, %61 : vector<8x16xf32>
      %63 = math.exp %62 : vector<8x16xf32>
      %cst_29 = arith.constant dense<0.000000e+00> : vector<8xf32>
      %64 = vector.multi_reduction <add>, %63, %cst_29 [1] : vector<8x16xf32> to vector<8xf32>
      %65 = vector.shape_cast %64 : vector<8xf32> to vector<8x1xf32>
      %66 = math.log %65 : vector<8x1xf32>
      %67 = vector.broadcast %66 : vector<8x1xf32> to vector<8x16xf32>
      %68 = arith.subf %62, %67 : vector<8x16xf32>
      %69 = tpu.iota {dimensions = array<i32: 1>} : vector<8x16xi32>
      %cst_30 = arith.constant 0.000000e+00 : f32
      %70 = vector.broadcast %cst_30 : f32 to vector<8x16xf32>
      %71 = arith.cmpf oeq, %37, %70 : vector<8x16xf32>
      %c16_i32 = arith.constant 16 : i32
      %72 = vector.broadcast %c16_i32 : i32 to vector<8x16xi32>
      %73 = arith.select %71, %69, %72 : vector<8x16xi1>, vector<8x16xi32>
      %cst_31 = arith.constant dense<2147483647> : vector<8xi32>
      %74 = vector.multi_reduction <minsi>, %73, %cst_31 [1] : vector<8x16xi32> to vector<8xi32>
      %75 = vector.shape_cast %74 : vector<8xi32> to vector<8x1xi32>
      %76 = vector.broadcast %75 : vector<8x1xi32> to vector<8x16xi32>
      %77 = arith.cmpi eq, %69, %76 : vector<8x16xi32>
      %78 = arith.andi %19, %77 : vector<8x16xi1>
      %cst_32 = arith.constant 0.000000e+00 : f32
      %79 = vector.broadcast %cst_32 : f32 to vector<8x16xf32>
      %80 = arith.select %78, %68, %79 : vector<8x16xi1>, vector<8x16xf32>
      %81 = vector.shape_cast %80 : vector<8x16xf32> to vector<1x8x16xf32>
      %cst_33 = arith.constant dense<0.000000e+00> : vector<1xf32>
      %82 = vector.multi_reduction <add>, %81, %cst_33 [1, 2] : vector<1x8x16xf32> to vector<1xf32>
      %83 = vector.shape_cast %82 : vector<1xf32> to vector<1x1x1xf32>
      %84 = vector.extract %83[0, 0, 0] : f32 from vector<1x1x1xf32>
      %cst_34 = arith.constant 0.000000e+00 : f32
      %85 = arith.subf %cst_34, %84 : f32
      %cst_35 = arith.constant 2.000000e+00 : f32
      %86 = arith.divf %85, %cst_35 : f32
      %cst_36 = arith.constant 1.000000e+00 : f32
      %87 = arith.mulf %86, %cst_36 : f32
      %88 = vector.broadcast %87 : f32 to vector<1x8x128xf32>
      %c0_37 = arith.constant 0 : index
      %c0_38 = arith.constant 0 : index
      %c0_39 = arith.constant 0 : index
      %89 = vector.load %arg7[%c0_37, %c0_38, %c0_39] : memref<1x8x128xf32, #tpu.memory_space<vmem>>, vector<1x8x128xf32>
      tpu.vector_store %arg7[%c0_37, %c0_38, %c0_39], %88 {strides = array<i32>} : memref<1x8x128xf32, #tpu.memory_space<vmem>>, vector<1x8x128xf32>,
    } else {
    }
    return
  }
  func.func @transform_0(%arg0: i32, %arg1: i32) -> (i32, i32) {
    %c0_i32 = arith.constant 0 : i32
    return %arg0, %arg1 : i32, i32
  }
  func.func @transform_1(%arg0: i32, %arg1: i32) -> (i32, i32) {
    %c0_i32 = arith.constant 0 : i32
    %c0_i32_0 = arith.constant 0 : i32
    return %c0_i32, %arg1 : i32, i32
  }
  func.func @transform_2(%arg0: i32, %arg1: i32) -> (i32, i32) {
    %c0_i32 = arith.constant 0 : i32
    %c0_i32_0 = arith.constant 0 : i32
    %c0_i32_1 = arith.constant 0 : i32
    return %c0_i32, %c0_i32_0 : i32, i32
  }
  func.func @transform_3(%arg0: i32, %arg1: i32) -> (i32, i32) {
    %c0_i32 = arith.constant 0 : i32
    %c0_i32_0 = arith.constant 0 : i32
    return %arg0, %c0_i32 : i32, i32
  }
  func.func @transform_4(%arg0: i32, %arg1: i32) -> (i32, i32, i32) {
    %c0_i32 = arith.constant 0 : i32
    %c0_i32_0 = arith.constant 0 : i32
    %c0_i32_1 = arith.constant 0 : i32
    return %arg0, %c0_i32, %c0_i32_0 : i32, i32, i32
  }
  func.func @transform_5(%arg0: i32, %arg1: i32) -> (i32, i32, i32) {
    %c0_i32 = arith.constant 0 : i32
    %c0_i32_0 = arith.constant 0 : i32
    %c0_i32_1 = arith.constant 0 : i32
    return %arg0, %c0_i32, %c0_i32_0 : i32, i32, i32
  }
}

</mosaic_0001>

<llo_original>
// kernel: tpu_custom_call.1
$region0: #{tpu_custom_call.1}
  #allocation0 [shape = 'u32[]', space=smem, size = 0x4, offset = 0x4, fixed_abs, tag = 'smem constant byte address 0x4 - core index']
  #allocation1 [shape = 'u32[72,128]{1,0:T(1,128)}', space=vmem, size = 0x9000, scoped, tag = 'internal scratch']
  #allocation2 [shape = 'f32[8,16]{1,0:T(8,128)}', space=vmem, size = 0x1000, scoped, tag = 'scratch operand']
  %s0 = inlined_call_operand.hbm [shape: bf16[8,1024], index: 0, kind: input, shape index: {}]
  %s1 = inlined_call_operand.hbm [shape: bf16[16,1024], index: 1, kind: input, shape index: {}]
  %s2 = inlined_call_operand.vmem [shape: f32[1,16], index: 2, kind: input, shape index: {}]
  %s3 = inlined_call_operand.hbm [shape: f32[8,16], index: 3, kind: input, shape index: {}]
  %s4 = inlined_call_operand.hbm [shape: f32[1,8,128], index: 4, kind: output, shape index: {0}]
  %s5 = inlined_call_operand.hbm [shape: f32[1,8,128], index: 5, kind: output, shape index: {1}]
  %6 = xla_tuple %s4, %s5
  %s7 = sld [smem:[#allocation0]]
  $region54: #{tpu_custom_call.1} parent=0
    _
  %s9 = ssub.s32 1, %s7
  %s10 = scalar_select 0, %s9, %s7
  $region1: #{tpu_custom_call.1} parent=0
    #allocation3 [shape = 'u8[16384]{0}', space=vmem, size = 0x4000, scoped, tag = 'input window, operand 0, single buffered']
    #allocation4 [shape = 's32[1]{0}', space=sflag, size = 0x4, scoped, tag = 'scoped memory for tpu_custom_call.1']
    #allocation5 [shape = 's32[1]{0}', space=sflag, size = 0x4, scoped, tag = 'scoped memory for tpu_custom_call.1']
    #allocation6 [shape = 'u8[32768]{0}', space=vmem, size = 0x8000, scoped, tag = 'input window, operand 1, single buffered']
    #allocation7 [shape = 's32[1]{0}', space=sflag, size = 0x4, scoped, tag = 'scoped memory for tpu_custom_call.1']
    #allocation8 [shape = 'u8[4096]{0}', space=vmem, size = 0x1000, scoped, tag = 'input window, operand 3, single buffered']
    #allocation9 [shape = 'u8[4096]{0}', space=vmem, size = 0x1000, scoped, tag = 'output window, operand 0, single buffered']
    #allocation10 [shape = 'u8[4096]{0}', space=vmem, size = 0x1000, scoped, tag = 'output window, operand 1, single buffered']
    #allocation11 [shape = 's32[1]{0}', space=sflag, size = 0x4, scoped, tag = 'scoped memory for tpu_custom_call.1']
    %11 = vsyncpa [#allocation4], 0
    %12 = vsyncpa [#allocation7], 0
    %13 = vsyncpa [#allocation5], 0
    %14 = vsyncpa [#allocation11], 0
    // Predicated region
    $region2: #{tpu_custom_call.1} parent=1 // pred_check
      _
    $region3: #{tpu_custom_call.1} parent=1 // pred_check_branch
      %16 = sbr.rel (0) target = $region5
    $region4: #{tpu_custom_call.1} parent=1 // pred_region
      %18 = vsyncadd [#allocation4], 0
      %s20 = sshll.u32 %s0, 4
      %s21 = int_to_ptr.hbm [resolvable:$true] %s20
      %s22 = sshll.u32 [#allocation3], 4
      %s23 = int_to_ptr.vmem [resolvable:$true] %s22
      %25 = dma.hbm_to_vmem [thread:$0]  %s21, 512, %s23, [#allocation4]
    $region5: #{tpu_custom_call.1} parent=1 // pred_fallthru
      _
    // Predicated region
    $region6: #{tpu_custom_call.1} parent=1 // pred_check
      _
    $region7: #{tpu_custom_call.1} parent=1 // pred_check_branch
      %27 = sbr.rel (0) target = $region9
    $region8: #{tpu_custom_call.1} parent=1 // pred_region
      %29 = vsyncadd [#allocation7], 0
      %s30 = sshll.u32 %s1, 4
      %s31 = int_to_ptr.hbm [resolvable:$true] %s30
      %s32 = sshll.u32 [#allocation6], 4
      %s33 = int_to_ptr.vmem [resolvable:$true] %s32
      %38 = dma.hbm_to_vmem [thread:$0]  %s31, 1024, %s33, [#allocation7], 512, 512, 32
    $region9: #{tpu_custom_call.1} parent=1 // pred_fallthru
      _
    // Predicated region
    $region10: #{tpu_custom_call.1} parent=1 // pred_check
      _
    $region11: #{tpu_custom_call.1} parent=1 // pred_check_branch
      %40 = sbr.rel (0) target = $region13
    $region12: #{tpu_custom_call.1} parent=1 // pred_region
      _
    $region13: #{tpu_custom_call.1} parent=1 // pred_fallthru
      _
    // Predicated region
    $region14: #{tpu_custom_call.1} parent=1 // pred_check
      _
    $region15: #{tpu_custom_call.1} parent=1 // pred_check_branch
      %42 = sbr.rel (0) target = $region17
    $region16: #{tpu_custom_call.1} parent=1 // pred_region
      %44 = vsyncadd [#allocation7], 0
      %s46 = sshll.u32 %s3, 4
      %s47 = int_to_ptr.hbm [resolvable:$true] %s46
      %s48 = sshll.u32 [#allocation8], 4
      %s49 = int_to_ptr.vmem [resolvable:$true] %s48
      %51 = dma.hbm_to_vmem [thread:$0]  %s47, 128, %s49, [#allocation7]
    $region17: #{tpu_custom_call.1} parent=1 // pred_fallthru
      _
    // Predicated region
    $region18: #{tpu_custom_call.1} parent=1 // pred_check
      _
    $region19: #{tpu_custom_call.1} parent=1 // pred_check_branch
      %53 = sbr.rel (0) target = $region21
    $region20: #{tpu_custom_call.1} parent=1 // pred_region
      %55 = dma.done [#allocation4], 512
    $region21: #{tpu_custom_call.1} parent=1 // pred_fallthru
      _
    // Predicated region
    $region22: #{tpu_custom_call.1} parent=1 // pred_check
      _
    $region23: #{tpu_custom_call.1} parent=1 // pred_check_branch
      %57 = sbr.rel (0) target = $region25
    $region24: #{tpu_custom_call.1} parent=1 // pred_region
      %59 = dma.done [#allocation7], 1024
    $region25: #{tpu_custom_call.1} parent=1 // pred_fallthru
      _
    // Predicated region
    $region26: #{tpu_custom_call.1} parent=1 // pred_check
      _
    $region27: #{tpu_custom_call.1} parent=1 // pred_check_branch
      %61 = sbr.rel (0) target = $region29
    $region28: #{tpu_custom_call.1} parent=1 // pred_region
      %63 = dma.done [#allocation7], 128
    $region29: #{tpu_custom_call.1} parent=1 // pred_fallthru
      _
    %p65 = scmp.eq.s32.totalorder 0, 0
    // Predicated region
    $region30: #{tpu_custom_call.1} parent=1 // pred_check
      %p66 = pneg %p65
    $region31: #{tpu_custom_call.1} parent=1 // pred_check_branch
      %68 = sbr.rel (%p66) target = $region33
    $region32: #{tpu_custom_call.1} parent=1 // pred_region
      %v69 = vld [vmem:[%s2] sm:$0x1]
      %v71 = vperm.slane %v69, 0
      %vm73 = vcmask 130048
      %74 = vst.msk [vmem:[#allocation2] sm:$0xff] %vm73, %v71
    $region33: #{tpu_custom_call.1} parent=1 // pred_fallthru
      _
    %v75 = vld [vmem:[#allocation2] sm:$0xff]
    %v76 = vld [vmem:[#allocation3] sm:$0xff]
    %v77 = vld [vmem:[#allocation3 + $0x8] sm:$0xff]
    %v78 = vld [vmem:[#allocation3 + $0x10] sm:$0xff]
    %v79 = vld [vmem:[#allocation3 + $0x18] sm:$0xff]
    %v80 = vld [vmem:[#allocation6] sm:$0xff]
    %v81 = vld [vmem:[#allocation6 + $0x8] sm:$0xff]
    %v82 = vld [vmem:[#allocation6 + $0x10] sm:$0xff]
    %v83 = vld [vmem:[#allocation6 + $0x18] sm:$0xff]
    %v84 = vld [vmem:[#allocation6 + $0x20] sm:$0xff]
    %v85 = vld [vmem:[#allocation6 + $0x28] sm:$0xff]
    %v86 = vld [vmem:[#allocation6 + $0x30] sm:$0xff]
    %v87 = vld [vmem:[#allocation6 + $0x38] sm:$0xff]
    %v92 = vunpack.c.l.b16 %v76
    %v93 = vunpack.c.h.b16 %v76
    %v94 = vunpack.c.l.b16 %v77
    %v95 = vunpack.c.h.b16 %v77
    %v96 = vunpack.c.l.b16 %v78
    %v97 = vunpack.c.h.b16 %v78
    %v98 = vunpack.c.l.b16 %v79
    %v99 = vunpack.c.h.b16 %v79
    %v100 = vpack.c.b16 %v92, %v92
    %v101 = vpack.c.b16 %v93, %v93
    %v102 = vpack.c.b16 %v94, %v94
    %v103 = vpack.c.b16 %v95, %v95
    %v104 = vpack.c.b16 %v96, %v96
    %v105 = vpack.c.b16 %v97, %v97
    %v106 = vpack.c.b16 %v98, %v98
    %v107 = vpack.c.b16 %v99, %v99
    %v124 = vunpack.c.l.b16 %v80
    %v125 = vunpack.c.h.b16 %v80
    %v126 = vunpack.c.l.b16 %v81
    %v127 = vunpack.c.h.b16 %v81
    %v128 = vunpack.c.l.b16 %v82
    %v129 = vunpack.c.h.b16 %v82
    %v130 = vunpack.c.l.b16 %v83
    %v131 = vunpack.c.h.b16 %v83
    %v132 = vunpack.c.l.b16 %v84
    %v133 = vunpack.c.h.b16 %v84
    %v134 = vunpack.c.l.b16 %v85
    %v135 = vunpack.c.h.b16 %v85
    %v136 = vunpack.c.l.b16 %v86
    %v137 = vunpack.c.h.b16 %v86
    %v138 = vunpack.c.l.b16 %v87
    %v139 = vunpack.c.h.b16 %v87
    %v140 = vpack.c.b16 %v132, %v124
    %v141 = vpack.c.b16 %v133, %v125
    %v142 = vpack.c.b16 %v134, %v126
    %v143 = vpack.c.b16 %v135, %v127
    %v144 = vpack.c.b16 %v136, %v128
    %v145 = vpack.c.b16 %v137, %v129
    %v146 = vpack.c.b16 %v138, %v130
    %v147 = vpack.c.b16 %v139, %v131
    %156 = vmatpush.bf16.xpose.msra.mxu0 0
    %157 = vmatpush.bf16.xpose.msra.mxu0 0
    %158 = vmatpush.bf16.xpose.msra.mxu0 0
    %159 = vmatpush.bf16.xpose.msra.mxu0 0
    %160 = vmatpush.bf16.xpose.msra.mxu0 0
    %161 = vmatpush.bf16.xpose.msra.mxu0 0
    %162 = vmatpush.bf16.xpose.msra.mxu0 0
    %163 = vmatpush.bf16.xpose.msra.mxu0 %v140
    %164 = vmatmul.bf16.gmra.mxu0 %v100
    %v165 = vpop.f32.mrf.mxu0
    %v166 = vadd.f32 0.0, %v165
    %v167 = vpop.f32.mrf.mxu0
    %168 = vdwg.mxu0
    %169 = vmatpush.bf16.xpose.msra.mxu0 0
    %170 = vmatpush.bf16.xpose.msra.mxu0 0
    %171 = vmatpush.bf16.xpose.msra.mxu0 0
    %172 = vmatpush.bf16.xpose.msra.mxu0 0
    %173 = vmatpush.bf16.xpose.msra.mxu0 0
    %174 = vmatpush.bf16.xpose.msra.mxu0 0
    %175 = vmatpush.bf16.xpose.msra.mxu0 0
    %176 = vmatpush.bf16.xpose.msra.mxu0 %v141
    %177 = vmatmul.bf16.gmra.mxu0 %v101
    %v178 = vpop.f32.mrf.mxu0
    %v179 = vadd.f32 %v166, %v178
    %v180 = vpop.f32.mrf.mxu0
    %181 = vdwg.mxu0
    %182 = vmatpush.bf16.xpose.msra.mxu0 0
    %183 = vmatpush.bf16.xpose.msra.mxu0 0
    %184 = vmatpush.bf16.xpose.msra.mxu0 0
    %185 = vmatpush.bf16.xpose.msra.mxu0 0
    %186 = vmatpush.bf16.xpose.msra.mxu0 0
    %187 = vmatpush.bf16.xpose.msra.mxu0 0
    %188 = vmatpush.bf16.xpose.msra.mxu0 0
    %189 = vmatpush.bf16.xpose.msra.mxu0 %v142
    %190 = vmatmul.bf16.gmra.mxu0 %v102
    %v191 = vpop.f32.mrf.mxu0
    %v192 = vadd.f32 %v179, %v191
    %v193 = vpop.f32.mrf.mxu0
    %194 = vdwg.mxu0
    %195 = vmatpush.bf16.xpose.msra.mxu0 0
    %196 = vmatpush.bf16.xpose.msra.mxu0 0
    %197 = vmatpush.bf16.xpose.msra.mxu0 0
    %198 = vmatpush.bf16.xpose.msra.mxu0 0
    %199 = vmatpush.bf16.xpose.msra.mxu0 0
    %200 = vmatpush.bf16.xpose.msra.mxu0 0
    %201 = vmatpush.bf16.xpose.msra.mxu0 0
    %202 = vmatpush.bf16.xpose.msra.mxu0 %v143
    %203 = vmatmul.bf16.gmra.mxu0 %v103
    %v204 = vpop.f32.mrf.mxu0
    %v205 = vadd.f32 %v192, %v204
    %v206 = vpop.f32.mrf.mxu0
    %207 = vdwg.mxu0
    %208 = vmatpush.bf16.xpose.msra.mxu0 0
    %209 = vmatpush.bf16.xpose.msra.mxu0 0
    %210 = vmatpush.bf16.xpose.msra.mxu0 0
    %211 = vmatpush.bf16.xpose.msra.mxu0 0
    %212 = vmatpush.bf16.xpose.msra.mxu0 0
    %213 = vmatpush.bf16.xpose.msra.mxu0 0
    %214 = vmatpush.bf16.xpose.msra.mxu0 0
    %215 = vmatpush.bf16.xpose.msra.mxu0 %v144
    %216 = vmatmul.bf16.gmra.mxu0 %v104
    %v217 = vpop.f32.mrf.mxu0
    %v218 = vadd.f32 %v205, %v217
    %v219 = vpop.f32.mrf.mxu0
    %220 = vdwg.mxu0
    %221 = vmatpush.bf16.xpose.msra.mxu0 0
    %222 = vmatpush.bf16.xpose.msra.mxu0 0
    %223 = vmatpush.bf16.xpose.msra.mxu0 0
    %224 = vmatpush.bf16.xpose.msra.mxu0 0
    %225 = vmatpush.bf16.xpose.msra.mxu0 0
    %226 = vmatpush.bf16.xpose.msra.mxu0 0
    %227 = vmatpush.bf16.xpose.msra.mxu0 0
    %228 = vmatpush.bf16.xpose.msra.mxu0 %v145
    %229 = vmatmul.bf16.gmra.mxu0 %v105
    %v230 = vpop.f32.mrf.mxu0
    %v231 = vadd.f32 %v218, %v230
    %v232 = vpop.f32.mrf.mxu0
    %233 = vdwg.mxu0
    %234 = vmatpush.bf16.xpose.msra.mxu0 0
    %235 = vmatpush.bf16.xpose.msra.mxu0 0
    %236 = vmatpush.bf16.xpose.msra.mxu0 0
    %237 = vmatpush.bf16.xpose.msra.mxu0 0
    %238 = vmatpush.bf16.xpose.msra.mxu0 0
    %239 = vmatpush.bf16.xpose.msra.mxu0 0
    %240 = vmatpush.bf16.xpose.msra.mxu0 0
    %241 = vmatpush.bf16.xpose.msra.mxu0 %v146
    %242 = vmatmul.bf16.gmra.mxu0 %v106
    %v243 = vpop.f32.mrf.mxu0
    %v244 = vadd.f32 %v231, %v243
    %v245 = vpop.f32.mrf.mxu0
    %246 = vdwg.mxu0
    %247 = vmatpush.bf16.xpose.msra.mxu0 0
    %248 = vmatpush.bf16.xpose.msra.mxu0 0
    %249 = vmatpush.bf16.xpose.msra.mxu0 0
    %250 = vmatpush.bf16.xpose.msra.mxu0 0
    %251 = vmatpush.bf16.xpose.msra.mxu0 0
    %252 = vmatpush.bf16.xpose.msra.mxu0 0
    %253 = vmatpush.bf16.xpose.msra.mxu0 0
    %254 = vmatpush.bf16.xpose.msra.mxu0 %v147
    %255 = vmatmul.bf16.gmra.mxu0 %v107
    %v256 = vpop.f32.mrf.mxu0
    %v257 = vadd.f32 %v244, %v256
    %v258 = vpop.f32.mrf.mxu0
    %259 = vdwg.mxu0
    %v260 = vadd.f32 %v75, %v257
    %vm261 = vcmask 130048
    %262 = vst.msk [vmem:[#allocation2] sm:$0xff] %vm261, %v260
    // Predicated region
    $region34: #{tpu_custom_call.1} parent=1 // pred_check
      %p263 = pneg %p65
    $region35: #{tpu_custom_call.1} parent=1 // pred_check_branch
      %265 = sbr.rel (%p263) target = $region37
    $region36: #{tpu_custom_call.1} parent=1 // pred_region
      %v266 = vld [vmem:[#allocation2] sm:$0xff]
      %v267 = vld [vmem:[#allocation8] sm:$0xff]
      %v268 = vlaneseq
      %v269 = vshrl.u32 %v268, 7
      %s270 = smul.u32 0, 8
      %v271 = vstv %s270
      %v272 = vadd.s32 %v269, %v271
      %vm273 = vcmp.lt.s32.totalorder %v272, 2
      %v274 = vmul.f32 %v267, 0.5
      %v275 = vsel %vm261, %v274, -inf
      %276 = vmax.xlane.f32.xlu0 %v275
      %v277 = vpop.xlane.xlu0 %276
      %v278 = vsub.f32 %v274, %v277
      %v279 = vmul.f32 %v278, 1.442695
      %v280 = vpow.pop %v279
      %v281 = vsel %vm261, %v280, 0.0
      %282 = vadd.xlane.f32.xlu0 %v281
      %v283 = vpop.xlane.xlu0 %282
      %v284 = vlog2.pop %v283
      %v285 = vmul.f32 %v284, 0.6931472
      %v286 = vsub.f32 %v278, %v285
      %v287 = vmul.f32 %v266, 0.5
      %v288 = vsel %vm261, %v287, -inf
      %289 = vmax.xlane.f32.xlu0 %v288
      %v290 = vpop.xlane.xlu0 %289
      %v291 = vsub.f32 %v287, %v290
      %v292 = vmul.f32 %v291, 1.442695
      %v293 = vpow.pop %v292
      %v294 = vsel %vm261, %v293, 0.0
      %295 = vadd.xlane.f32.xlu0 %v294
      %v296 = vpop.xlane.xlu0 %295
      %v297 = vlog2.pop %v296
      %v298 = vmul.f32 %v297, 0.6931472
      %v299 = vsub.f32 %v291, %v298
      %v300 = vrcp.pop %v296
      %v301 = vmul.f32 %v296, %v300
      %v302 = vsub.f32 1.0, %v301
      %v303 = vmul.f32 %v300, %v302
      %v304 = vadd.f32 %v300, %v303
      %vm305 = vweird.f32 %v296
      %vm306 = vweird.f32 %v300
      %vm307 = vmor %vm305, %vm306
      %v308 = vsel %vm307, %v300, %v304
      %v309 = vand.u32 2147483647, %v296
      %vm310 = vcmp.eq.f32.partialorder %v309, 8.507059e+37
      %v311 = vand.u32 %v296, 2147483648
      %v312 = vor.u32 1.1754944e-38, %v311
      %v313 = vsel %vm310, %v312, %v308
      %v314 = vmul.f32 %v293, %v313
      %v315 = vsub.f32 %v299, %v286
      %v316 = vmul.f32 %v314, %v315
      %v317 = vsel %vm273, %v316, 0.0
      %v318 = vsel %vm261, %v317, 0.0
      %319 = vadd.xlane.f32.xlu0 %v318
      %v320 = vpop.xlane.xlu0 %319
      %v321 = vrot.slane %v320, 4
      %v322 = vadd.f32 %v320, %v321
      %v323 = vrot.slane %v322, 2
      %v324 = vadd.f32 %v322, %v323
      %v325 = vrot.slane %v324, 1
      %v326 = vadd.f32 %v324, %v325
      %s327 = vtos %v326
      %s328 = smul.f32 %s327, 4.0
      %v329 = vrcp.pop 32.0
      %v330 = vmul.f32 32.0, %v329
      %v331 = vsub.f32 1.0, %v330
      %v332 = vmul.f32 %v329, %v331
      %v333 = vadd.f32 %v329, %v332
      %vm334 = vweird.f32 %v329
      %v335 = vsel %vm334, %v329, %v333
      %s336 = vtos %v335
      %s337 = smul.f32 %s328, %s336
      %v338 = vstv %s337
      %339 = vst [vmem:[#allocation9] sm:$0xff] %v338
      %v340 = vsel %vm261, %v267, -inf
      %341 = vmax.xlane.f32.xlu0 %v340
      %v342 = vpop.xlane.xlu0 %341
      %v343 = vsub.f32 %v267, %v342
      %v344 = vmul.f32 %v343, 1.442695
      %v345 = vpow.pop %v344
      %v346 = vsel %vm261, %v345, 0.0
      %347 = vadd.xlane.f32.xlu0 %v346
      %v348 = vpop.xlane.xlu0 %347
      %v349 = vlog2.pop %v348
      %v350 = vmul.f32 %v349, 0.6931472
      %v351 = vsub.f32 %v343, %v350
      %v352 = vlaneseq
      %v353 = vand.u32 %v352, 127
      %vm354 = vcmp.eq.f32.partialorder %v291, 0.0
      %v355 = vsel %vm354, %v353, 16
      %v356 = vsel %vm261, %v355, 2147483647
      %v357 = vand.u32 %v356, 65535
      %v358 = vshra.s32 %v356, 16
      %v359 = vcvt.s32.f32 %v357
      %v360 = vcvt.s32.f32 %v358
      %361 = vmin.xlane.f32.xlu0 %v360
      %v362 = vpop.xlane.xlu0 %361
      %vm363 = vcmp.eq.f32.partialorder %v360, %v362
      %v364 = vsel %vm363, %v359, inf
      %365 = vmin.xlane.f32.xlu0 %v364
      %v366 = vpop.xlane.xlu0 %365
      %v367 = vcvt.f32.s32 %v366
      %v368 = vcvt.f32.s32 %v362
      %v369 = vshll.u32 %v368, 16
      %v370 = vadd.s32 %v369, %v367
      %vm371 = vcmp.eq.s32.totalorder %v353, %v370
      %vm372 = vmand %vm273, %vm371
      %v373 = vsel %vm372, %v351, 0.0
      %v374 = vsel %vm261, %v373, 0.0
      %375 = vadd.xlane.f32.xlu0 %v374
      %v376 = vpop.xlane.xlu0 %375
      %v377 = vrot.slane %v376, 4
      %v378 = vadd.f32 %v376, %v377
      %v379 = vrot.slane %v378, 2
      %v380 = vadd.f32 %v378, %v379
      %v381 = vrot.slane %v380, 1
      %v382 = vadd.f32 %v380, %v381
      %s383 = vtos %v382
      %s384 = ssub.f32 0.0, %s383
      %v385 = vrcp.pop 2.0
      %v386 = vmul.f32 2.0, %v385
      %v387 = vsub.f32 1.0, %v386
      %v388 = vmul.f32 %v385, %v387
      %v389 = vadd.f32 %v385, %v388
      %vm390 = vweird.f32 %v385
      %v391 = vsel %vm390, %v385, %v389
      %s392 = vtos %v391
      %s393 = smul.f32 %s384, %s392
      %v394 = vstv %s393
      %395 = vst [vmem:[#allocation10] sm:$0xff] %v394
    $region37: #{tpu_custom_call.1} parent=1 // pred_fallthru
      _
    // Predicated region
    $region38: #{tpu_custom_call.1} parent=1 // pred_check
      _
    $region39: #{tpu_custom_call.1} parent=1 // pred_check_branch
      %397 = sbr.rel (0) target = $region41
    $region40: #{tpu_custom_call.1} parent=1 // pred_region
      %399 = vsyncadd [#allocation5], 0
      %s401 = sshll.u32 [#allocation9], 4
      %s402 = int_to_ptr.vmem [resolvable:$true] %s401
      %s403 = sshll.u32 %s4, 4
      %s404 = int_to_ptr.hbm [resolvable:$true] %s403
      %406 = dma.vmem_to_hbm [thread:$0]  %s402, 128, %s404, [#allocation5]
    $region41: #{tpu_custom_call.1} parent=1 // pred_fallthru
      _
    // Predicated region
    $region42: #{tpu_custom_call.1} parent=1 // pred_check
      _
    $region43: #{tpu_custom_call.1} parent=1 // pred_check_branch
      %408 = sbr.rel (0) target = $region45
    $region44: #{tpu_custom_call.1} parent=1 // pred_region
      %410 = vsyncadd [#allocation11], 0
      %s412 = sshll.u32 [#allocation10], 4
      %s413 = int_to_ptr.vmem [resolvable:$true] %s412
      %s414 = sshll.u32 %s5, 4
      %s415 = int_to_ptr.hbm [resolvable:$true] %s414
      %417 = dma.vmem_to_hbm [thread:$0]  %s413, 128, %s415, [#allocation11]
    $region45: #{tpu_custom_call.1} parent=1 // pred_fallthru
      _
    // Predicated region
    $region46: #{tpu_custom_call.1} parent=1 // pred_check
      _
    $region47: #{tpu_custom_call.1} parent=1 // pred_check_branch
      %419 = sbr.rel (0) target = $region49
    $region48: #{tpu_custom_call.1} parent=1 // pred_region
      %421 = dma.done [#allocation5], 128
    $region49: #{tpu_custom_call.1} parent=1 // pred_fallthru
      _
    // Predicated region
    $region50: #{tpu_custom_call.1} parent=1 // pred_check
      _
    $region51: #{tpu_custom_call.1} parent=1 // pred_check_branch
      %423 = sbr.rel (0) target = $region53
    $region52: #{tpu_custom_call.1} parent=1 // pred_region
      %425 = dma.done [#allocation11], 128
    $region53: #{tpu_custom_call.1} parent=1 // pred_fallthru
      _
    %426 = vsyncpa [#allocation4], 1
    %427 = vsyncpa [#allocation7], 1
    %428 = vsyncpa [#allocation5], 1
    %429 = vsyncpa [#allocation11], 1

</llo_original>
